<compile_context>
chip_gen: v7x
topology: tpu7x:2x2x1
jax: 0.10.0
libtpu: 0.0.40
codegen_flags: <defaults>
</compile_context>

<pallas_src>
import jax
import jax.numpy as jnp
from jax.experimental import pallas as pl
from jax.experimental.pallas import tpu as pltpu


def acnet_kernel(state_ref, w1_ref, w2_ref, bias_ref, out_ref):
    h2 = w1_ref.shape[1]                                    # 512 (fused hidden)

    x = state_ref[...].astype(jnp.bfloat16)                 # [B, D]

    # Fused layer 1: one MXU pass covers both heads' first Linear + ReLU.
    h = jnp.dot(x, w1_ref[...], preferred_element_type=jnp.float32)
    h = jnp.maximum(h + bias_ref[:, :h2], 0.0)              # [B, 512] f32

    # Fused layer 2: block-diagonal weights -> single lane-dense [B, 128] out.
    y = jnp.dot(h.astype(jnp.bfloat16), w2_ref[...],
                preferred_element_type=jnp.float32)
    out_ref[...] = (y + bias_ref[:, h2:]).astype(out_ref.dtype)


def ac_network_forward(state, fused, *, batch_tile=256):
    """state: [B, observ_dim] f32.  fused: output of fuse_params().

    Returns (dist [B, action_dim], value [B, 1]) matching the PyTorch forward.
    """
    B, D = state.shape
    H2 = fused["w1"].shape[1]          # 512
    OUT = fused["w2"].shape[1]         # 128 (lane-dense padded A+1)
    A = fused["action_dim"]

    out_shape = jax.ShapeDtypeStruct((B, OUT), jnp.float32)

    if B % batch_tile == 0 and B // batch_tile >= 2:
        # Large batch: grid over batch only; weights use a constant index_map
        # (fetched once, kept resident) and the batch axis is marked parallel
        # so multi-TensorCore chips shard it.
        grid_spec = pltpu.PrefetchScalarGridSpec(
            num_scalar_prefetch=0,
            grid=(B // batch_tile,),
            in_specs=[
                pl.BlockSpec((batch_tile, D), lambda i: (i, 0)),
                pl.BlockSpec((D, H2), lambda i: (0, 0)),
                pl.BlockSpec((H2, OUT), lambda i: (0, 0)),
                pl.BlockSpec((1, H2 + OUT), lambda i: (0, 0)),
            ],
            out_specs=pl.BlockSpec((batch_tile, OUT), lambda i: (i, 0)),
        )
        out = pl.pallas_call(
            acnet_kernel,
            out_shape=out_shape,
            grid_spec=grid_spec,
            compiler_params=pltpu.CompilerParams(
                dimension_semantics=("parallel",)),
        )(state, fused["w1"], fused["w2"], fused["bias"])
    else:
        # Small batch: single grid-less call, everything resident in VMEM.
        vmem = pl.BlockSpec(memory_space=pltpu.MemorySpace.VMEM)
        out = pl.pallas_call(
            acnet_kernel,
            out_shape=out_shape,
            in_specs=[vmem] * 4,
            out_specs=vmem,
        )(state, fused["w1"], fused["w2"], fused["bias"])

    return out[:, :A], out[:, A:A + 1]


def init_params(key, observ_dim, action_dim, hidden=256):
    """Deterministic init mirroring nn.Linear's U(-1/sqrt(fan_in), +1/sqrt(fan_in)).

    Weights are stored as [in, out] (transposed vs. PyTorch's [out, in]);
    biases as [1, out].
    """
    def linear(k, fan_in, fan_out):
        kw, kb = jax.random.split(k)
        bound = 1.0 / jnp.sqrt(fan_in)
        w = jax.random.uniform(kw, (fan_in, fan_out), jnp.float32, -bound, bound)
        b = jax.random.uniform(kb, (1, fan_out), jnp.float32, -bound, bound)
        return w, b

    k1, k2, k3, k4 = jax.random.split(key, 4)
    pw1, pb1 = linear(k1, observ_dim, hidden)
    pw2, pb2 = linear(k2, hidden, action_dim)
    vw1, vb1 = linear(k3, observ_dim, hidden)
    vw2, vb2 = linear(k4, hidden, 1)
    return dict(pw1=pw1, pb1=pb1, pw2=pw2, pb2=pb2,
                vw1=vw1, vb1=vb1, vw2=vw2, vb2=vb2)


def fuse_params(p, action_dim):
    """Fuse the 4 Linear layers into 3 slabs consumed by the kernel."""
    H = p["pw1"].shape[1]                                   # 256
    out_pad = max(128, ((action_dim + 1 + 127) // 128) * 128)

    # Layer-1 fusion: [D, 2H] weight + [1, 2H] bias.
    w1 = jnp.concatenate([p["pw1"], p["vw1"]], axis=1)
    b1 = jnp.concatenate([p["pb1"], p["vb1"]], axis=1)

    # Layer-2 fusion: block-diagonal [2H, out_pad] weight + padded bias.
    w2 = jnp.zeros((2 * H, out_pad), jnp.float32)
    w2 = w2.at[:H, :action_dim].set(p["pw2"])
    w2 = w2.at[H:, action_dim].set(p["vw2"][:, 0])
    b2 = jnp.zeros((1, out_pad), jnp.float32)
    b2 = b2.at[0, :action_dim].set(p["pb2"][0])
    b2 = b2.at[0, action_dim].set(p["vb2"][0, 0])

    return dict(
        w1=w1.astype(jnp.bfloat16),                         # [D, 512] bf16
        w2=w2.astype(jnp.bfloat16),                         # [512, 128] bf16
        bias=jnp.concatenate([b1, b2], axis=1),             # [1, 640] f32
        action_dim=action_dim,
    )


def ac_network_ref(state, p):
    """Pure-JAX f32 reference matching the PyTorch forward."""
    h_p = jnp.maximum(state @ p["pw1"] + p["pb1"], 0.0)
    dist = h_p @ p["pw2"] + p["pb2"]
    h_v = jnp.maximum(state @ p["vw1"] + p["vb1"], 0.0)
    value = h_v @ p["vw2"] + p["vb2"]
    return dist, value


if __name__ == "__main__":
    observ_dim, action_dim, hidden = 32, 8, 256

    key = jax.random.PRNGKey(0)
    k_params, k_state = jax.random.split(key)
    params = init_params(k_params, observ_dim, action_dim, hidden)
    fused = fuse_params(params, action_dim)

    # --- small-batch path (single grid-less call, all VMEM-resident) ---
    batch = 64
    state = jax.random.normal(k_state, (batch, observ_dim), jnp.float32)
    dist, value = ac_network_forward(state, fused)
    jax.block_until_ready((dist, value))

    dist_ref, value_ref = ac_network_ref(state, params)
    assert dist.shape == (batch, action_dim)
    assert value.shape == (batch, 1)
    assert jnp.allclose(dist, dist_ref, atol=2e-2, rtol=2e-2)
    assert jnp.allclose(value, value_ref, atol=2e-2, rtol=2e-2)

    # --- large-batch path (grid over batch, parallel-sharded across TCs) ---
    big_batch = 512
    big_state = jax.random.normal(jax.random.PRNGKey(1),
                                  (big_batch, observ_dim), jnp.float32)
    dist_b, value_b = ac_network_forward(big_state, fused, batch_tile=256)
    jax.block_until_ready((dist_b, value_b))

    dist_b_ref, value_b_ref = ac_network_ref(big_state, params)
    assert dist_b.shape == (big_batch, action_dim)
    assert value_b.shape == (big_batch, 1)
    assert jnp.allclose(dist_b, dist_b_ref, atol=2e-2, rtol=2e-2)
    assert jnp.allclose(value_b, value_b_ref, atol=2e-2, rtol=2e-2)

    print("KERNEL_OK")
</pallas_src>

<mosaic_0001>
module attributes {stable_mosaic.version = 11 : i64} {
  func.func @acnet_kernel(%arg0: memref<64x32xf32, #tpu.memory_space<vmem>>, %arg1: memref<32x512xbf16, #tpu.memory_space<vmem>>, %arg2: memref<512x128xbf16, #tpu.memory_space<vmem>>, %arg3: memref<1x640xf32, #tpu.memory_space<vmem>>, %arg4: memref<64x128xf32, #tpu.memory_space<vmem>>) attributes {dimension_semantics = [], scalar_prefetch = 0 : i64, scratch_operands = 0 : i64, tpu.core_type = #tpu.core_type<tc>} {
    %c0 = arith.constant 0 : index
    %c0_0 = arith.constant 0 : index
    %0 = vector.load %arg0[%c0, %c0_0] : memref<64x32xf32, #tpu.memory_space<vmem>>, vector<64x32xf32>
    %1 = arith.truncf %0 : vector<64x32xf32> to vector<64x32xbf16>
    %c0_1 = arith.constant 0 : index
    %c0_2 = arith.constant 0 : index
    %2 = vector.load %arg1[%c0_1, %c0_2] : memref<32x512xbf16, #tpu.memory_space<vmem>>, vector<32x512xbf16>
    %cst = arith.constant dense<0.000000e+00> : vector<64x512xf32>
    %3 = tpu.matmul %1, %2, %cst {dimension_numbers = #tpu.dot_dimension_numbers<[1], [0], [0], [1], [0, 0, 1, 1], [], []>} : vector<64x32xbf16>, vector<32x512xbf16>, vector<64x512xf32> -> vector<64x512xf32>
    %c0_3 = arith.constant 0 : index
    %c0_4 = arith.constant 0 : index
    %4 = vector.load %arg3[%c0_3, %c0_4] : memref<1x640xf32, #tpu.memory_space<vmem>>, vector<1x512xf32>
    %5 = vector.broadcast %4 : vector<1x512xf32> to vector<64x512xf32>
    %6 = arith.addf %3, %5 : vector<64x512xf32>
    %cst_5 = arith.constant 0.000000e+00 : f32
    %7 = vector.broadcast %cst_5 : f32 to vector<64x512xf32>
    %8 = arith.maximumf %6, %7 : vector<64x512xf32>
    %9 = arith.truncf %8 : vector<64x512xf32> to vector<64x512xbf16>
    %c0_6 = arith.constant 0 : index
    %c0_7 = arith.constant 0 : index
    %10 = vector.load %arg2[%c0_6, %c0_7] : memref<512x128xbf16, #tpu.memory_space<vmem>>, vector<512x128xbf16>
    %cst_8 = arith.constant dense<0.000000e+00> : vector<64x128xf32>
    %11 = tpu.matmul %9, %10, %cst_8 {dimension_numbers = #tpu.dot_dimension_numbers<[1], [0], [0], [1], [0, 0, 1, 1], [], []>} : vector<64x512xbf16>, vector<512x128xbf16>, vector<64x128xf32> -> vector<64x128xf32>
    %c0_9 = arith.constant 0 : index
    %c512 = arith.constant 512 : index
    %12 = vector.load %arg3[%c0_9, %c512] : memref<1x640xf32, #tpu.memory_space<vmem>>, vector<1x128xf32>
    %13 = vector.broadcast %12 : vector<1x128xf32> to vector<64x128xf32>
    %14 = arith.addf %11, %13 : vector<64x128xf32>
    %c0_10 = arith.constant 0 : index
    %c0_11 = arith.constant 0 : index
    %15 = vector.load %arg4[%c0_10, %c0_11] : memref<64x128xf32, #tpu.memory_space<vmem>>, vector<64x128xf32>
    tpu.vector_store %arg4[%c0_10, %c0_11], %14 {strides = array<i32>} : memref<64x128xf32, #tpu.memory_space<vmem>>, vector<64x128xf32>,
    return
  }
}

</mosaic_0001>

<llo_original>
// kernel: tpu_custom_call.1
$region0: #{tpu_custom_call.1}
  #allocation0 [shape = 'u32[]', space=smem, size = 0x4, offset = 0x4, fixed_abs, tag = 'smem constant byte address 0x4 - core index']
  #allocation1 [shape = 'u32[144,128]{1,0:T(1,128)}', space=vmem, size = 0x12000, scoped, tag = 'internal scratch']
  %s0 = inlined_call_operand.vmem [shape: f32[64,32], index: 0, kind: input, shape index: {}]
  %s1 = inlined_call_operand.vmem [shape: bf16[32,512], index: 1, kind: input, shape index: {}]
  %s2 = inlined_call_operand.hbm [shape: bf16[512,128], index: 2, kind: input, shape index: {}]
  %s3 = inlined_call_operand.vmem [shape: f32[1,640], index: 3, kind: input, shape index: {}]
  %s4 = inlined_call_operand.hbm [shape: f32[64,128], index: 4, kind: output, shape index: {}]
  %s5 = sld [smem:[#allocation0]]
  $region30: #{tpu_custom_call.1} parent=0
    _
  %s7 = ssub.s32 1, %s5
  %s8 = scalar_select 0, %s7, %s5
  $region1: #{tpu_custom_call.1} parent=0
    #allocation2 [shape = 'u8[131072]{0}', space=vmem, size = 0x20000, scoped, tag = 'input window, operand 2, single buffered']
    #allocation3 [shape = 's32[1]{0}', space=sflag, size = 0x4, scoped, tag = 'scoped memory for tpu_custom_call.1']
    #allocation4 [shape = 's32[1]{0}', space=sflag, size = 0x4, scoped, tag = 'scoped memory for tpu_custom_call.1']
    #allocation5 [shape = 'u8[32768]{0}', space=vmem, size = 0x8000, scoped, tag = 'output window, operand 0, single buffered']
    %9 = vsyncpa [#allocation3], 0
    %10 = vsyncpa [#allocation4], 0
    // Predicated region
    $region2: #{tpu_custom_call.1} parent=1 // pred_check
      _
    $region3: #{tpu_custom_call.1} parent=1 // pred_check_branch
      %12 = sbr.rel (0) target = $region5
    $region4: #{tpu_custom_call.1} parent=1 // pred_region
      _
    $region5: #{tpu_custom_call.1} parent=1 // pred_fallthru
      _
    // Predicated region
    $region6: #{tpu_custom_call.1} parent=1 // pred_check
      _
    $region7: #{tpu_custom_call.1} parent=1 // pred_check_branch
      %14 = sbr.rel (0) target = $region9
    $region8: #{tpu_custom_call.1} parent=1 // pred_region
      _
    $region9: #{tpu_custom_call.1} parent=1 // pred_fallthru
      _
    // Predicated region
    $region10: #{tpu_custom_call.1} parent=1 // pred_check
      _
    $region11: #{tpu_custom_call.1} parent=1 // pred_check_branch
      %16 = sbr.rel (0) target = $region13
    $region12: #{tpu_custom_call.1} parent=1 // pred_region
      %s18 = ssub.s32 4096, 4096
      %19 = vsyncadd [#allocation3], %s18
      %s20 = sshll.u32 [#allocation2], 4
      %s21 = int_to_ptr.vmem [resolvable:$true] %s20
      %26 = dma.hbm_to_vmem [thread:$0]  %s2, 4096, %s21, [#allocation3], 64, 64, 4
    $region13: #{tpu_custom_call.1} parent=1 // pred_fallthru
      _
    // Predicated region
    $region14: #{tpu_custom_call.1} parent=1 // pred_check
      _
    $region15: #{tpu_custom_call.1} parent=1 // pred_check_branch
      %28 = sbr.rel (0) target = $region17
    $region16: #{tpu_custom_call.1} parent=1 // pred_region
      _
    $region17: #{tpu_custom_call.1} parent=1 // pred_fallthru
      _
    // Predicated region
    $region18: #{tpu_custom_call.1} parent=1 // pred_check
      _
    $region19: #{tpu_custom_call.1} parent=1 // pred_check_branch
      %30 = sbr.rel (0) target = $region21
    $region20: #{tpu_custom_call.1} parent=1 // pred_region
      %31 = dma.done [#allocation3], 4096
    $region21: #{tpu_custom_call.1} parent=1 // pred_fallthru
      _
    %v33 = vld [vmem:[%s0] sm:$0xff]
    %v34 = vld [vmem:[%s0 + $0x8] sm:$0xff]
    %v35 = vld [vmem:[%s0 + $0x10] sm:$0xff]
    %v36 = vld [vmem:[%s0 + $0x18] sm:$0xff]
    %v37 = vld [vmem:[%s0 + $0x20] sm:$0xff]
    %v38 = vld [vmem:[%s0 + $0x28] sm:$0xff]
    %v39 = vld [vmem:[%s0 + $0x30] sm:$0xff]
    %v40 = vld [vmem:[%s0 + $0x38] sm:$0xff]
    %v41 = vpack.c.bf16 %v34, %v33
    %v42 = vpack.c.bf16 %v36, %v35
    %v43 = vpack.c.bf16 %v38, %v37
    %v44 = vpack.c.bf16 %v40, %v39
    %v45 = vld [vmem:[%s1] sm:$0xff]
    %v46 = vld [vmem:[%s1 + $0x8] sm:$0xff]
    %v47 = vld [vmem:[%s1 + $0x10] sm:$0xff]
    %v48 = vld [vmem:[%s1 + $0x18] sm:$0xff]
    %v49 = vld [vmem:[%s1 + $0x20] sm:$0xff]
    %v50 = vld [vmem:[%s1 + $0x28] sm:$0xff]
    %v51 = vld [vmem:[%s1 + $0x30] sm:$0xff]
    %v52 = vld [vmem:[%s1 + $0x38] sm:$0xff]
    %v53 = vld [vmem:[%s3] sm:$0xf]
    %v55 = vlaneseq
    %v56 = vshrl.u32 %v55, 7
    %v57 = vsub.s32 0, %v56
    %v58 = vrot.slane %v53, %v57
    %v59 = vlaneseq
    %v60 = vshrl.u32 %v59, 7
    %v61 = vsub.s32 1, %v60
    %v62 = vrot.slane %v53, %v61
    %v63 = vlaneseq
    %v64 = vshrl.u32 %v63, 7
    %v65 = vsub.s32 2, %v64
    %v66 = vrot.slane %v53, %v65
    %v67 = vlaneseq
    %v68 = vshrl.u32 %v67, 7
    %v69 = vsub.s32 3, %v68
    %v70 = vrot.slane %v53, %v69
    %v83 = vunpack.c.l.b16 %v45
    %v84 = vunpack.c.h.b16 %v45
    %v85 = vunpack.c.l.b16 %v46
    %v86 = vunpack.c.h.b16 %v46
    %v87 = vunpack.c.l.b16 %v47
    %v88 = vunpack.c.h.b16 %v47
    %v89 = vunpack.c.l.b16 %v48
    %v90 = vunpack.c.h.b16 %v48
    %v91 = vunpack.c.l.b16 %v49
    %v92 = vunpack.c.h.b16 %v49
    %v93 = vunpack.c.l.b16 %v50
    %v94 = vunpack.c.h.b16 %v50
    %v95 = vunpack.c.l.b16 %v51
    %v96 = vunpack.c.h.b16 %v51
    %v97 = vunpack.c.l.b16 %v52
    %v98 = vunpack.c.h.b16 %v52
    %v99 = vpack.c.b16 %v87, %v83
    %v100 = vpack.c.b16 %v88, %v84
    %v101 = vpack.c.b16 %v89, %v85
    %v102 = vpack.c.b16 %v90, %v86
    %v103 = vpack.c.b16 %v95, %v91
    %v104 = vpack.c.b16 %v96, %v92
    %v105 = vpack.c.b16 %v97, %v93
    %v106 = vpack.c.b16 %v98, %v94
    %vm115 = vcmask 261120
    %v117 = vsel %vm115, %v41, 0
    %v120 = vsel %vm115, %v42, 0
    %v123 = vsel %vm115, %v43, 0
    %v126 = vsel %vm115, %v44, 0
    %128 = vmatprep.subr.bf16.mxu0 %v100
    %129 = vmatpush1.bf16.msra.mxu0 %v99
    %130 = vmatprep.subr.bf16.mxu0 %v104
    %131 = vmatpush1.bf16.msra.mxu0 %v103
    %132 = vmatprep.subr.bf16.mxu0 0
    %133 = vmatpush1.bf16.msra.mxu0 0
    %134 = vmatprep.subr.bf16.mxu0 0
    %135 = vmatpush1.bf16.msra.mxu0 0
    %136 = vmatprep.subr.bf16.mxu0 0
    %137 = vmatpush1.bf16.msra.mxu0 0
    %138 = vmatprep.subr.bf16.mxu0 0
    %139 = vmatpush1.bf16.msra.mxu0 0
    %140 = vmatprep.subr.bf16.mxu0 0
    %141 = vmatpush1.bf16.msra.mxu0 0
    %142 = vmatprep.subr.bf16.mxu0 0
    %143 = vmatpush1.bf16.msra.mxu0 0
    %144 = vmatprep.subr.bf16.mxu0 0
    %145 = vmatpush1.bf16.msra.mxu0 0
    %146 = vmatprep.subr.bf16.mxu0 0
    %147 = vmatpush1.bf16.msra.mxu0 0
    %148 = vmatprep.subr.bf16.mxu0 0
    %149 = vmatpush1.bf16.msra.mxu0 0
    %150 = vmatprep.subr.bf16.mxu0 0
    %151 = vmatpush1.bf16.msra.mxu0 0
    %152 = vmatprep.subr.bf16.mxu0 0
    %153 = vmatpush1.bf16.msra.mxu0 0
    %154 = vmatprep.subr.bf16.mxu0 0
    %155 = vmatpush1.bf16.msra.mxu0 0
    %156 = vmatprep.subr.bf16.mxu0 0
    %157 = vmatpush1.bf16.msra.mxu0 0
    %158 = vmatprep.subr.bf16.mxu0 0
    %159 = vmatpush1.bf16.msra.mxu0 0
    %160 = vmatprep.mubr.bf16.mxu0 0
    %161 = vmatmul.mubr.bf16.gmra.mrb[0].mxu0 %v117
    %v162 = vpop.f32.mrb[0].mxu0
    %v163 = vadd.f32 %v58, %v162
    %v164 = vpop.f32.mrb[0].mxu0
    %v165 = vadd.f32 %v62, %v164
    %v166 = vpop.f32.mrb[0].mxu0
    %v167 = vadd.f32 %v58, %v166
    %v168 = vpop.f32.mrb[0].mxu0
    %v169 = vadd.f32 %v62, %v168
    %170 = vmatprep.mubr.bf16.mxu0 0
    %171 = vmatmul.mubr.bf16.gmra.mrb[0].mxu0 %v120
    %v172 = vpop.f32.mrb[0].mxu0
    %v173 = vadd.f32 %v58, %v172
    %v174 = vpop.f32.mrb[0].mxu0
    %v175 = vadd.f32 %v62, %v174
    %v176 = vpop.f32.mrb[0].mxu0
    %v177 = vadd.f32 %v58, %v176
    %v178 = vpop.f32.mrb[0].mxu0
    %v179 = vadd.f32 %v62, %v178
    %180 = vmatprep.mubr.bf16.mxu0 0
    %181 = vmatmul.mubr.bf16.gmra.mrb[0].mxu0 %v123
    %v182 = vpop.f32.mrb[0].mxu0
    %v183 = vadd.f32 %v58, %v182
    %v184 = vpop.f32.mrb[0].mxu0
    %v185 = vadd.f32 %v62, %v184
    %v186 = vpop.f32.mrb[0].mxu0
    %v187 = vadd.f32 %v58, %v186
    %v188 = vpop.f32.mrb[0].mxu0
    %v189 = vadd.f32 %v62, %v188
    %190 = vmatprep.mubr.bf16.mxu0 0
    %191 = vmatmul.mubr.bf16.gmra.mrb[0].mxu0 %v126
    %v192 = vpop.f32.mrb[0].mxu0
    %v193 = vadd.f32 %v58, %v192
    %v194 = vpop.f32.mrb[0].mxu0
    %v195 = vadd.f32 %v62, %v194
    %v196 = vpop.f32.mrb[0].mxu0
    %v197 = vadd.f32 %v58, %v196
    %v198 = vpop.f32.mrb[0].mxu0
    %v199 = vadd.f32 %v62, %v198
    %200 = vdwg.mxu0
    %201 = vmatprep.subr.bf16.mxu0 %v102
    %202 = vmatpush1.bf16.msra.mxu0 %v101
    %203 = vmatprep.subr.bf16.mxu0 %v106
    %204 = vmatpush1.bf16.msra.mxu0 %v105
    %205 = vmatprep.subr.bf16.mxu0 0
    %206 = vmatpush1.bf16.msra.mxu0 0
    %207 = vmatprep.subr.bf16.mxu0 0
    %208 = vmatpush1.bf16.msra.mxu0 0
    %209 = vmatprep.subr.bf16.mxu0 0
    %210 = vmatpush1.bf16.msra.mxu0 0
    %211 = vmatprep.subr.bf16.mxu0 0
    %212 = vmatpush1.bf16.msra.mxu0 0
    %213 = vmatprep.subr.bf16.mxu0 0
    %214 = vmatpush1.bf16.msra.mxu0 0
    %215 = vmatprep.subr.bf16.mxu0 0
    %216 = vmatpush1.bf16.msra.mxu0 0
    %217 = vmatprep.subr.bf16.mxu0 0
    %218 = vmatpush1.bf16.msra.mxu0 0
    %219 = vmatprep.subr.bf16.mxu0 0
    %220 = vmatpush1.bf16.msra.mxu0 0
    %221 = vmatprep.subr.bf16.mxu0 0
    %222 = vmatpush1.bf16.msra.mxu0 0
    %223 = vmatprep.subr.bf16.mxu0 0
    %224 = vmatpush1.bf16.msra.mxu0 0
    %225 = vmatprep.subr.bf16.mxu0 0
    %226 = vmatpush1.bf16.msra.mxu0 0
    %227 = vmatprep.subr.bf16.mxu0 0
    %228 = vmatpush1.bf16.msra.mxu0 0
    %229 = vmatprep.subr.bf16.mxu0 0
    %230 = vmatpush1.bf16.msra.mxu0 0
    %231 = vmatprep.subr.bf16.mxu0 0
    %232 = vmatpush1.bf16.msra.mxu0 0
    %233 = vmatprep.mubr.bf16.mxu0 0
    %234 = vmatmul.mubr.bf16.gmra.mrb[0].mxu0 %v117
    %v235 = vpop.f32.mrb[0].mxu0
    %v236 = vadd.f32 %v66, %v235
    %v237 = vpop.f32.mrb[0].mxu0
    %v238 = vadd.f32 %v70, %v237
    %v239 = vpop.f32.mrb[0].mxu0
    %v240 = vadd.f32 %v66, %v239
    %v241 = vpop.f32.mrb[0].mxu0
    %v242 = vadd.f32 %v70, %v241
    %243 = vmatprep.mubr.bf16.mxu0 0
    %244 = vmatmul.mubr.bf16.gmra.mrb[0].mxu0 %v120
    %v245 = vpop.f32.mrb[0].mxu0
    %v246 = vadd.f32 %v66, %v245
    %v247 = vpop.f32.mrb[0].mxu0
    %v248 = vadd.f32 %v70, %v247
    %v249 = vpop.f32.mrb[0].mxu0
    %v250 = vadd.f32 %v66, %v249
    %v251 = vpop.f32.mrb[0].mxu0
    %v252 = vadd.f32 %v70, %v251
    %253 = vmatprep.mubr.bf16.mxu0 0
    %254 = vmatmul.mubr.bf16.gmra.mrb[0].mxu0 %v123
    %v255 = vpop.f32.mrb[0].mxu0
    %v256 = vadd.f32 %v66, %v255
    %v257 = vpop.f32.mrb[0].mxu0
    %v258 = vadd.f32 %v70, %v257
    %v259 = vpop.f32.mrb[0].mxu0
    %v260 = vadd.f32 %v66, %v259
    %v261 = vpop.f32.mrb[0].mxu0
    %v262 = vadd.f32 %v70, %v261
    %263 = vmatprep.mubr.bf16.mxu0 0
    %264 = vmatmul.mubr.bf16.gmra.mrb[0].mxu0 %v126
    %v265 = vpop.f32.mrb[0].mxu0
    %v266 = vadd.f32 %v66, %v265
    %v267 = vpop.f32.mrb[0].mxu0
    %v268 = vadd.f32 %v70, %v267
    %v269 = vpop.f32.mrb[0].mxu0
    %v270 = vadd.f32 %v66, %v269
    %v271 = vpop.f32.mrb[0].mxu0
    %v272 = vadd.f32 %v70, %v271
    %273 = vdwg.mxu0
    %v274 = vmax.f32 %v163, 0.0
    %v275 = vmax.f32 %v165, 0.0
    %v276 = vmax.f32 %v236, 0.0
    %v277 = vmax.f32 %v238, 0.0
    %v278 = vmax.f32 %v167, 0.0
    %v279 = vmax.f32 %v169, 0.0
    %v280 = vmax.f32 %v240, 0.0
    %v281 = vmax.f32 %v242, 0.0
    %v282 = vmax.f32 %v173, 0.0
    %v283 = vmax.f32 %v175, 0.0
    %v284 = vmax.f32 %v246, 0.0
    %v285 = vmax.f32 %v248, 0.0
    %v286 = vmax.f32 %v177, 0.0
    %v287 = vmax.f32 %v179, 0.0
    %v288 = vmax.f32 %v250, 0.0
    %v289 = vmax.f32 %v252, 0.0
    %v290 = vmax.f32 %v183, 0.0
    %v291 = vmax.f32 %v185, 0.0
    %v292 = vmax.f32 %v256, 0.0
    %v293 = vmax.f32 %v258, 0.0
    %v294 = vmax.f32 %v187, 0.0
    %v295 = vmax.f32 %v189, 0.0
    %v296 = vmax.f32 %v260, 0.0
    %v297 = vmax.f32 %v262, 0.0
    %v298 = vmax.f32 %v193, 0.0
    %v299 = vmax.f32 %v195, 0.0
    %v300 = vmax.f32 %v266, 0.0
    %v301 = vmax.f32 %v268, 0.0
    %v302 = vmax.f32 %v197, 0.0
    %v303 = vmax.f32 %v199, 0.0
    %v304 = vmax.f32 %v270, 0.0
    %v305 = vmax.f32 %v272, 0.0
    %v306 = vpack.c.bf16 %v278, %v274
    %v307 = vpack.c.bf16 %v279, %v275
    %v308 = vpack.c.bf16 %v280, %v276
    %v309 = vpack.c.bf16 %v281, %v277
    %v310 = vpack.c.bf16 %v286, %v282
    %v311 = vpack.c.bf16 %v287, %v283
    %v312 = vpack.c.bf16 %v288, %v284
    %v313 = vpack.c.bf16 %v289, %v285
    %v314 = vpack.c.bf16 %v294, %v290
    %v315 = vpack.c.bf16 %v295, %v291
    %v316 = vpack.c.bf16 %v296, %v292
    %v317 = vpack.c.bf16 %v297, %v293
    %v318 = vpack.c.bf16 %v302, %v298
    %v319 = vpack.c.bf16 %v303, %v299
    %v320 = vpack.c.bf16 %v304, %v300
    %v321 = vpack.c.bf16 %v305, %v301
    %v322 = vld [vmem:[#allocation2] sm:$0xf]
    %v323 = vld [vmem:[#allocation2 + $0x4] sm:$0xf]
    %v324 = vld [vmem:[#allocation2 + $0x8] sm:$0xf]
    %v325 = vld [vmem:[#allocation2 + $0xc] sm:$0xf]
    %v326 = vld [vmem:[#allocation2 + $0x10] sm:$0xf]
    %v327 = vld [vmem:[#allocation2 + $0x14] sm:$0xf]
    %v328 = vld [vmem:[#allocation2 + $0x18] sm:$0xf]
    %v329 = vld [vmem:[#allocation2 + $0x1c] sm:$0xf]
    %v330 = vld [vmem:[#allocation2 + $0x20] sm:$0xf]
    %v331 = vld [vmem:[#allocation2 + $0x24] sm:$0xf]
    %v332 = vld [vmem:[#allocation2 + $0x28] sm:$0xf]
    %v333 = vld [vmem:[#allocation2 + $0x2c] sm:$0xf]
    %v334 = vld [vmem:[#allocation2 + $0x30] sm:$0xf]
    %v335 = vld [vmem:[#allocation2 + $0x34] sm:$0xf]
    %v336 = vld [vmem:[#allocation2 + $0x38] sm:$0xf]
    %v337 = vld [vmem:[#allocation2 + $0x3c] sm:$0xf]
    %v338 = vld [vmem:[#allocation2 + $0x40] sm:$0xf]
    %v339 = vld [vmem:[#allocation2 + $0x44] sm:$0xf]
    %v340 = vld [vmem:[#allocation2 + $0x48] sm:$0xf]
    %v341 = vld [vmem:[#allocation2 + $0x4c] sm:$0xf]
    %v342 = vld [vmem:[#allocation2 + $0x50] sm:$0xf]
    %v343 = vld [vmem:[#allocation2 + $0x54] sm:$0xf]
    %v344 = vld [vmem:[#allocation2 + $0x58] sm:$0xf]
    %v345 = vld [vmem:[#allocation2 + $0x5c] sm:$0xf]
    %v346 = vld [vmem:[#allocation2 + $0x60] sm:$0xf]
    %v347 = vld [vmem:[#allocation2 + $0x64] sm:$0xf]
    %v348 = vld [vmem:[#allocation2 + $0x68] sm:$0xf]
    %v349 = vld [vmem:[#allocation2 + $0x6c] sm:$0xf]
    %v350 = vld [vmem:[#allocation2 + $0x70] sm:$0xf]
    %v351 = vld [vmem:[#allocation2 + $0x74] sm:$0xf]
    %v352 = vld [vmem:[#allocation2 + $0x78] sm:$0xf]
    %v353 = vld [vmem:[#allocation2 + $0x7c] sm:$0xf]
    %v354 = vld [vmem:[#allocation2 + $0x80] sm:$0xf]
    %v355 = vld [vmem:[#allocation2 + $0x84] sm:$0xf]
    %v356 = vld [vmem:[#allocation2 + $0x88] sm:$0xf]
    %v357 = vld [vmem:[#allocation2 + $0x8c] sm:$0xf]
    %v358 = vld [vmem:[#allocation2 + $0x90] sm:$0xf]
    %v359 = vld [vmem:[#allocation2 + $0x94] sm:$0xf]
    %v360 = vld [vmem:[#allocation2 + $0x98] sm:$0xf]
    %v361 = vld [vmem:[#allocation2 + $0x9c] sm:$0xf]
    %v362 = vld [vmem:[#allocation2 + $0xa0] sm:$0xf]
    %v363 = vld [vmem:[#allocation2 + $0xa4] sm:$0xf]
    %v364 = vld [vmem:[#allocation2 + $0xa8] sm:$0xf]
    %v365 = vld [vmem:[#allocation2 + $0xac] sm:$0xf]
    %v366 = vld [vmem:[#allocation2 + $0xb0] sm:$0xf]
    %v367 = vld [vmem:[#allocation2 + $0xb4] sm:$0xf]
    %v368 = vld [vmem:[#allocation2 + $0xb8] sm:$0xf]
    %v369 = vld [vmem:[#allocation2 + $0xbc] sm:$0xf]
    %v370 = vld [vmem:[#allocation2 + $0xc0] sm:$0xf]
    %v371 = vld [vmem:[#allocation2 + $0xc4] sm:$0xf]
    %v372 = vld [vmem:[#allocation2 + $0xc8] sm:$0xf]
    %v373 = vld [vmem:[#allocation2 + $0xcc] sm:$0xf]
    %v374 = vld [vmem:[#allocation2 + $0xd0] sm:$0xf]
    %v375 = vld [vmem:[#allocation2 + $0xd4] sm:$0xf]
    %v376 = vld [vmem:[#allocation2 + $0xd8] sm:$0xf]
    %v377 = vld [vmem:[#allocation2 + $0xdc] sm:$0xf]
    %v378 = vld [vmem:[#allocation2 + $0xe0] sm:$0xf]
    %v379 = vld [vmem:[#allocation2 + $0xe4] sm:$0xf]
    %v380 = vld [vmem:[#allocation2 + $0xe8] sm:$0xf]
    %v381 = vld [vmem:[#allocation2 + $0xec] sm:$0xf]
    %v382 = vld [vmem:[#allocation2 + $0xf0] sm:$0xf]
    %v383 = vld [vmem:[#allocation2 + $0xf4] sm:$0xf]
    %v384 = vld [vmem:[#allocation2 + $0xf8] sm:$0xf]
    %v385 = vld [vmem:[#allocation2 + $0xfc] sm:$0xf]
    %v386 = vld [vmem:[%s3 + $0x4] sm:$0x1]
    %v388 = vlaneseq
    %v389 = vshrl.u32 %v388, 7
    %v390 = vsub.s32 0, %v389
    %v391 = vrot.slane %v386, %v390
    %v457 = vunpack.c.l.b16 %v322
    %v458 = vunpack.c.l.b16 %v323
    %v459 = vunpack.c.l.b16 %v324
    %v460 = vunpack.c.l.b16 %v325
    %v461 = vunpack.c.l.b16 %v326
    %v462 = vunpack.c.l.b16 %v327
    %v463 = vunpack.c.l.b16 %v328
    %v464 = vunpack.c.l.b16 %v329
    %v465 = vunpack.c.l.b16 %v330
    %v466 = vunpack.c.l.b16 %v331
    %v467 = vunpack.c.l.b16 %v332
    %v468 = vunpack.c.l.b16 %v333
    %v469 = vunpack.c.l.b16 %v334
    %v470 = vunpack.c.l.b16 %v335
    %v471 = vunpack.c.l.b16 %v336
    %v472 = vunpack.c.l.b16 %v337
    %v473 = vunpack.c.l.b16 %v338
    %v474 = vunpack.c.l.b16 %v339
    %v475 = vunpack.c.l.b16 %v340
    %v476 = vunpack.c.l.b16 %v341
    %v477 = vunpack.c.l.b16 %v342
    %v478 = vunpack.c.l.b16 %v343
    %v479 = vunpack.c.l.b16 %v344
    %v480 = vunpack.c.l.b16 %v345
    %v481 = vunpack.c.l.b16 %v346
    %v482 = vunpack.c.l.b16 %v347
    %v483 = vunpack.c.l.b16 %v348
    %v484 = vunpack.c.l.b16 %v349
    %v485 = vunpack.c.l.b16 %v350
    %v486 = vunpack.c.l.b16 %v351
    %v487 = vunpack.c.l.b16 %v352
    %v488 = vunpack.c.l.b16 %v353
    %v489 = vunpack.c.l.b16 %v354
    %v490 = vunpack.c.l.b16 %v355
    %v491 = vunpack.c.l.b16 %v356
    %v492 = vunpack.c.l.b16 %v357
    %v493 = vunpack.c.l.b16 %v358
    %v494 = vunpack.c.l.b16 %v359
    %v495 = vunpack.c.l.b16 %v360
    %v496 = vunpack.c.l.b16 %v361
    %v497 = vunpack.c.l.b16 %v362
    %v498 = vunpack.c.l.b16 %v363
    %v499 = vunpack.c.l.b16 %v364
    %v500 = vunpack.c.l.b16 %v365
    %v501 = vunpack.c.l.b16 %v366
    %v502 = vunpack.c.l.b16 %v367
    %v503 = vunpack.c.l.b16 %v368
    %v504 = vunpack.c.l.b16 %v369
    %v505 = vunpack.c.l.b16 %v370
    %v506 = vunpack.c.l.b16 %v371
    %v507 = vunpack.c.l.b16 %v372
    %v508 = vunpack.c.l.b16 %v373
    %v509 = vunpack.c.l.b16 %v374
    %v510 = vunpack.c.l.b16 %v375
    %v511 = vunpack.c.l.b16 %v376
    %v512 = vunpack.c.l.b16 %v377
    %v513 = vunpack.c.l.b16 %v378
    %v514 = vunpack.c.l.b16 %v379
    %v515 = vunpack.c.l.b16 %v380
    %v516 = vunpack.c.l.b16 %v381
    %v517 = vunpack.c.l.b16 %v382
    %v518 = vunpack.c.l.b16 %v383
    %v519 = vunpack.c.l.b16 %v384
    %v520 = vunpack.c.l.b16 %v385
    %v521 = vpack.c.b16 %v458, %v457
    %v522 = vpack.c.b16 %v460, %v459
    %v523 = vpack.c.b16 %v462, %v461
    %v524 = vpack.c.b16 %v464, %v463
    %v525 = vpack.c.b16 %v466, %v465
    %v526 = vpack.c.b16 %v468, %v467
    %v527 = vpack.c.b16 %v470, %v469
    %v528 = vpack.c.b16 %v472, %v471
    %v529 = vpack.c.b16 %v474, %v473
    %v530 = vpack.c.b16 %v476, %v475
    %v531 = vpack.c.b16 %v478, %v477
    %v532 = vpack.c.b16 %v480, %v479
    %v533 = vpack.c.b16 %v482, %v481
    %v534 = vpack.c.b16 %v484, %v483
    %v535 = vpack.c.b16 %v486, %v485
    %v536 = vpack.c.b16 %v488, %v487
    %v537 = vpack.c.b16 %v490, %v489
    %v538 = vpack.c.b16 %v492, %v491
    %v539 = vpack.c.b16 %v494, %v493
    %v540 = vpack.c.b16 %v496, %v495
    %v541 = vpack.c.b16 %v498, %v497
    %v542 = vpack.c.b16 %v500, %v499
    %v543 = vpack.c.b16 %v502, %v501
    %v544 = vpack.c.b16 %v504, %v503
    %v545 = vpack.c.b16 %v506, %v505
    %v546 = vpack.c.b16 %v508, %v507
    %v547 = vpack.c.b16 %v510, %v509
    %v548 = vpack.c.b16 %v512, %v511
    %v549 = vpack.c.b16 %v514, %v513
    %v550 = vpack.c.b16 %v516, %v515
    %v551 = vpack.c.b16 %v518, %v517
    %v552 = vpack.c.b16 %v520, %v519
    %585 = vmatprep.subr.bf16.mxu0 0
    %586 = vmatpush1.bf16.msra.mxu0 %v521
    %587 = vmatprep.subr.bf16.mxu0 0
    %588 = vmatpush1.bf16.msra.mxu0 %v522
    %589 = vmatprep.subr.bf16.mxu0 0
    %590 = vmatpush1.bf16.msra.mxu0 %v523
    %591 = vmatprep.subr.bf16.mxu0 0
    %592 = vmatpush1.bf16.msra.mxu0 %v524
    %593 = vmatprep.subr.bf16.mxu0 0
    %594 = vmatpush1.bf16.msra.mxu0 %v525
    %595 = vmatprep.subr.bf16.mxu0 0
    %596 = vmatpush1.bf16.msra.mxu0 %v526
    %597 = vmatprep.subr.bf16.mxu0 0
    %598 = vmatpush1.bf16.msra.mxu0 %v527
    %599 = vmatprep.subr.bf16.mxu0 0
    %600 = vmatpush1.bf16.msra.mxu0 %v528
    %601 = vmatprep.subr.bf16.mxu0 0
    %602 = vmatpush1.bf16.msra.mxu0 %v529
    %603 = vmatprep.subr.bf16.mxu0 0
    %604 = vmatpush1.bf16.msra.mxu0 %v530
    %605 = vmatprep.subr.bf16.mxu0 0
    %606 = vmatpush1.bf16.msra.mxu0 %v531
    %607 = vmatprep.subr.bf16.mxu0 0
    %608 = vmatpush1.bf16.msra.mxu0 %v532
    %609 = vmatprep.subr.bf16.mxu0 0
    %610 = vmatpush1.bf16.msra.mxu0 %v533
    %611 = vmatprep.subr.bf16.mxu0 0
    %612 = vmatpush1.bf16.msra.mxu0 %v534
    %613 = vmatprep.subr.bf16.mxu0 0
    %614 = vmatpush1.bf16.msra.mxu0 %v535
    %615 = vmatprep.subr.bf16.mxu0 0
    %616 = vmatpush1.bf16.msra.mxu0 %v536
    %617 = vmatprep.mubr.bf16.mxu0 %v307
    %618 = vmatmul.mubr.bf16.gmra.mrb[0].mxu0 %v306
    %v619 = vpop.f32.mrb[0].mxu0
    %v620 = vadd.f32 %v391, %v619
    %v621 = vpop.f32.mrb[0].mxu0
    %v622 = vpop.f32.mrb[0].mxu0
    %v623 = vadd.f32 %v391, %v622
    %v624 = vpop.f32.mrb[0].mxu0
    %625 = vmatprep.mubr.bf16.mxu0 %v311
    %626 = vmatmul.mubr.bf16.gmra.mrb[0].mxu0 %v310
    %v627 = vpop.f32.mrb[0].mxu0
    %v628 = vadd.f32 %v391, %v627
    %v629 = vpop.f32.mrb[0].mxu0
    %v630 = vpop.f32.mrb[0].mxu0
    %v631 = vadd.f32 %v391, %v630
    %v632 = vpop.f32.mrb[0].mxu0
    %633 = vmatprep.mubr.bf16.mxu0 %v315
    %634 = vmatmul.mubr.bf16.gmra.mrb[0].mxu0 %v314
    %v635 = vpop.f32.mrb[0].mxu0
    %v636 = vadd.f32 %v391, %v635
    %v637 = vpop.f32.mrb[0].mxu0
    %v638 = vpop.f32.mrb[0].mxu0
    %v639 = vadd.f32 %v391, %v638
    %v640 = vpop.f32.mrb[0].mxu0
    %641 = vmatprep.mubr.bf16.mxu0 %v319
    %642 = vmatmul.mubr.bf16.gmra.mrb[0].mxu0 %v318
    %v643 = vpop.f32.mrb[0].mxu0
    %v644 = vadd.f32 %v391, %v643
    %v645 = vpop.f32.mrb[0].mxu0
    %v646 = vpop.f32.mrb[0].mxu0
    %v647 = vadd.f32 %v391, %v646
    %v648 = vpop.f32.mrb[0].mxu0
    %649 = vdwg.mxu0
    %650 = vmatprep.subr.bf16.mxu0 0
    %651 = vmatpush1.bf16.msra.mxu0 %v537
    %652 = vmatprep.subr.bf16.mxu0 0
    %653 = vmatpush1.bf16.msra.mxu0 %v538
    %654 = vmatprep.subr.bf16.mxu0 0
    %655 = vmatpush1.bf16.msra.mxu0 %v539
    %656 = vmatprep.subr.bf16.mxu0 0
    %657 = vmatpush1.bf16.msra.mxu0 %v540
    %658 = vmatprep.subr.bf16.mxu0 0
    %659 = vmatpush1.bf16.msra.mxu0 %v541
    %660 = vmatprep.subr.bf16.mxu0 0
    %661 = vmatpush1.bf16.msra.mxu0 %v542
    %662 = vmatprep.subr.bf16.mxu0 0
    %663 = vmatpush1.bf16.msra.mxu0 %v543
    %664 = vmatprep.subr.bf16.mxu0 0
    %665 = vmatpush1.bf16.msra.mxu0 %v544
    %666 = vmatprep.subr.bf16.mxu0 0
    %667 = vmatpush1.bf16.msra.mxu0 %v545
    %668 = vmatprep.subr.bf16.mxu0 0
    %669 = vmatpush1.bf16.msra.mxu0 %v546
    %670 = vmatprep.subr.bf16.mxu0 0
    %671 = vmatpush1.bf16.msra.mxu0 %v547
    %672 = vmatprep.subr.bf16.mxu0 0
    %673 = vmatpush1.bf16.msra.mxu0 %v548
    %674 = vmatprep.subr.bf16.mxu0 0
    %675 = vmatpush1.bf16.msra.mxu0 %v549
    %676 = vmatprep.subr.bf16.mxu0 0
    %677 = vmatpush1.bf16.msra.mxu0 %v550
    %678 = vmatprep.subr.bf16.mxu0 0
    %679 = vmatpush1.bf16.msra.mxu0 %v551
    %680 = vmatprep.subr.bf16.mxu0 0
    %681 = vmatpush1.bf16.msra.mxu0 %v552
    %682 = vmatprep.mubr.bf16.mxu0 %v309
    %683 = vmatmul.mubr.bf16.gmra.mrb[0].mxu0 %v308
    %v684 = vpop.f32.mrb[0].mxu0
    %v685 = vadd.f32 %v620, %v684
    %v686 = vpop.f32.mrb[0].mxu0
    %v687 = vpop.f32.mrb[0].mxu0
    %v688 = vadd.f32 %v623, %v687
    %v689 = vpop.f32.mrb[0].mxu0
    %690 = vmatprep.mubr.bf16.mxu0 %v313
    %691 = vmatmul.mubr.bf16.gmra.mrb[0].mxu0 %v312
    %v692 = vpop.f32.mrb[0].mxu0
    %v693 = vadd.f32 %v628, %v692
    %v694 = vpop.f32.mrb[0].mxu0
    %v695 = vpop.f32.mrb[0].mxu0
    %v696 = vadd.f32 %v631, %v695
    %v697 = vpop.f32.mrb[0].mxu0
    %698 = vmatprep.mubr.bf16.mxu0 %v317
    %699 = vmatmul.mubr.bf16.gmra.mrb[0].mxu0 %v316
    %v700 = vpop.f32.mrb[0].mxu0
    %v701 = vadd.f32 %v636, %v700
    %v702 = vpop.f32.mrb[0].mxu0
    %v703 = vpop.f32.mrb[0].mxu0
    %v704 = vadd.f32 %v639, %v703
    %v705 = vpop.f32.mrb[0].mxu0
    %706 = vmatprep.mubr.bf16.mxu0 %v321
    %707 = vmatmul.mubr.bf16.gmra.mrb[0].mxu0 %v320
    %v708 = vpop.f32.mrb[0].mxu0
    %v709 = vadd.f32 %v644, %v708
    %v710 = vpop.f32.mrb[0].mxu0
    %v711 = vpop.f32.mrb[0].mxu0
    %v712 = vadd.f32 %v647, %v711
    %v713 = vpop.f32.mrb[0].mxu0
    %714 = vdwg.mxu0
    %715 = vst [vmem:[#allocation5] sm:$0xff] %v685
    %716 = vst [vmem:[#allocation5 + $0x8] sm:$0xff] %v688
    %717 = vst [vmem:[#allocation5 + $0x10] sm:$0xff] %v693
    %718 = vst [vmem:[#allocation5 + $0x18] sm:$0xff] %v696
    %719 = vst [vmem:[#allocation5 + $0x20] sm:$0xff] %v701
    %720 = vst [vmem:[#allocation5 + $0x28] sm:$0xff] %v704
    %721 = vst [vmem:[#allocation5 + $0x30] sm:$0xff] %v709
    %722 = vst [vmem:[#allocation5 + $0x38] sm:$0xff] %v712
    // Predicated region
    $region22: #{tpu_custom_call.1} parent=1 // pred_check
      _
    $region23: #{tpu_custom_call.1} parent=1 // pred_check_branch
      %724 = sbr.rel (0) target = $region25
    $region24: #{tpu_custom_call.1} parent=1 // pred_region
      %s726 = ssub.s32 1024, 1024
      %727 = vsyncadd [#allocation4], %s726
      %s728 = sshll.u32 [#allocation5], 4
      %s729 = int_to_ptr.vmem [resolvable:$true] %s728
      %734 = dma.vmem_to_hbm [thread:$0]  %s729, 1024, %s4, [#allocation4], 128, 128, 8
    $region25: #{tpu_custom_call.1} parent=1 // pred_fallthru
      _
    // Predicated region
    $region26: #{tpu_custom_call.1} parent=1 // pred_check
      _
    $region27: #{tpu_custom_call.1} parent=1 // pred_check_branch
      %736 = sbr.rel (0) target = $region29
    $region28: #{tpu_custom_call.1} parent=1 // pred_region
      %737 = dma.done [#allocation4], 1024
    $region29: #{tpu_custom_call.1} parent=1 // pred_fallthru
      _
    %738 = vsyncpa [#allocation3], 1
    %739 = vsyncpa [#allocation4], 1

</llo_original>
